<compile_context>
chip_gen: v6e
topology: v6e:2x2x1
jax: 0.10.0
libtpu: 0.0.40
codegen_flags: <defaults>
</compile_context>

<pallas_src>
import math

import jax
import jax.numpy as jnp
from jax import lax
from jax.experimental import pallas as pl
from jax.experimental.pallas import tpu as pltpu


def get_slopes(n):
    def get_slopes_power_of_2(n):
        start = 2 ** (-2 ** (-(math.log2(n) - 3)))
        ratio = start
        return [start * ratio ** i for i in range(n)]
    if math.log2(n).is_integer():
        return get_slopes_power_of_2(n)
    closest = 2 ** math.floor(math.log2(n))
    return (get_slopes_power_of_2(closest)
            + get_slopes(2 * closest)[0::2][: n - closest])


def _make_proj_kernel(heads, dim_head, dv):
    """Pass 1: q = x @ (scale*Wq)^T, k = x @ Wk^T, v = head-split of x."""
    def kernel(x_ref, wq_ref, wk_ref, q_ref, k_ref, v_ref):
        x = x_ref[0]                                   # (TR, dim) bf16
        tr = x.shape[0]
        dn = (((1,), (1,)), ((), ()))                  # contract `dim` of both
        # Transposed projections W @ x^T (bf16 operands, f32 accumulate): the
        # head split is then a tile-aligned sublane reshape (lane dim fixed).
        qT = lax.dot_general(wq_ref[...], x, dn,
                             preferred_element_type=jnp.float32)  # (inner, TR)
        kT = lax.dot_general(wk_ref[...], x, dn,
                             preferred_element_type=jnp.float32)  # (inner, TR)
        # q stored head-major (heads, TR, dh) so the attention kernel needs no
        # in-loop transpose.  (swapaxes kept in f32 for packed-transpose
        # portability on v5e; it runs once per row tile, not per kv step.)
        q3 = jnp.swapaxes(qT.reshape(heads, dim_head, tr), 1, 2)
        q_ref[0] = q3.astype(jnp.bfloat16)
        # k stays in its natural transposed layout (heads, dh, TR).
        k_ref[0] = kT.reshape(heads, dim_head, tr).astype(jnp.bfloat16)
        # v = Identity(x) split per head: static lane slices of the x tile that
        # is already resident (no extra HBM read of x, no host transpose).
        for h in range(heads):
            v_ref[0, h] = x[:, h * dv:(h + 1) * dv]
    return kernel


def _make_attn_kernel(heads, dv):
    """Pass 2: key-tiled online-softmax attention with ALiBi bias."""
    def kernel(q_ref, k_ref, v_ref, pq_ref, pk_ref, slope_ref, o_ref,
               m_sc, l_sc, acc_sc):
        ki = pl.program_id(2)

        @pl.when(ki == 0)
        def _():
            m_sc[...] = jnp.full_like(m_sc, -jnp.inf)
            l_sc[...] = jnp.zeros_like(l_sc)
            acc_sc[...] = jnp.zeros_like(acc_sc)

        # One batched MXU contraction for all heads: (h,TQ,dh) x (h,dh,TK).
        s = lax.dot_general(q_ref[0], k_ref[0],
                            (((2,), (1,)), ((0,), (0,))),
                            preferred_element_type=jnp.float32)   # (h, TQ, TK)

        # ALiBi bias: rel[i, j] = -|pos_k[j] - pos_q[i]|   (f32 VPU).
        rel = -jnp.abs(pk_ref[0] - pq_ref[0])                     # (TQ, TK)
        s = s + slope_ref[...] * rel[None, :, :]

        # Online softmax over keys.  All math in f32 (v5e-safe); on v6e/v7x
        # the exp could be taken in bf16 if the EUP slot saturates.
        m_prev = m_sc[...]
        m_new = jnp.maximum(m_prev, jnp.max(s, axis=-1, keepdims=True))
        alpha = jnp.exp(m_prev - m_new)
        e = jnp.exp(s - m_new)
        l_sc[...] = alpha * l_sc[...] + jnp.sum(e, axis=-1, keepdims=True)
        # Deferred normalization: un-normalized weights go straight to the MXU.
        acc_sc[...] = alpha * acc_sc[...] + lax.dot_general(
            e.astype(jnp.bfloat16), v_ref[0],
            (((2,), (1,)), ((0,), (0,))),
            preferred_element_type=jnp.float32)                   # (h, TQ, dv)
        m_sc[...] = m_new

        # TODO(synk): dropout omitted (module default dropout=0.0 -> identity).

        @pl.when(ki == pl.num_programs(2) - 1)
        def _():
            # Single normalization multiply on (h,TQ,dv) (EUP reciprocal,
            # ~2^-12 rel. error vs exact softmax), then merge heads by storing
            # directly into the output block.
            out = acc_sc[...] * pl.reciprocal(l_sc[...], approx=True)
            for h in range(heads):
                o_ref[0, :, h * dv:(h + 1) * dv] = out[h].astype(o_ref.dtype)
    return kernel


def attention_positional_bias(x, positions, wq, wk, slopes, heads, dim_head):
    """x: (B,N,dim) f32; positions: (B,N); wq/wk: (inner,dim) (torch Linear layout);
    slopes: (heads,). Returns (B, N, dim) f32."""
    B, N, dim = x.shape
    inner = heads * dim_head
    assert wq.shape == (inner, dim) and wk.shape == (inner, dim)
    assert dim % heads == 0
    dv = dim // heads
    scale = dim_head ** -0.5

    # Row / query / key tiles: 128 at production N (v6e could take TQ=256
    # given its 128 MiB VMEM), full N for tiny sequences.
    TQ = N if N <= 128 else 128
    TK = N if N <= 128 else 128
    TR = TQ
    assert N % TQ == 0 and N % TK == 0 and N % TR == 0, \
        "sequence length must be divisible by the tile sizes"

    # Host-side prep (cheap): bf16 operands, softmax scale folded into Wq.
    xb = x.astype(jnp.bfloat16)
    wq_b = (wq * scale).astype(jnp.bfloat16)
    wk_b = wk.astype(jnp.bfloat16)
    pos_f = positions.astype(jnp.float32)
    pos_q = pos_f.reshape(B, N, 1)
    pos_k = pos_f.reshape(B, 1, N)
    slopes3 = slopes.astype(jnp.float32).reshape(heads, 1, 1)

    vmem_limit = 64 * 1024 * 1024   # explicit: above v5e/v6e scoped defaults,
                                    # within v7x's 64 MiB physical VMEM.

    # ---------------- pass 1: projections + per-head V split -----------------
    qh, kh, vh = pl.pallas_call(
        _make_proj_kernel(heads, dim_head, dv),
        out_shape=(
            jax.ShapeDtypeStruct((B, heads, N, dim_head), jnp.bfloat16),   # q
            jax.ShapeDtypeStruct((B, heads, dim_head, N), jnp.bfloat16),   # k^T
            jax.ShapeDtypeStruct((B, heads, N, dv), jnp.bfloat16),         # v
        ),
        grid_spec=pltpu.PrefetchScalarGridSpec(
            num_scalar_prefetch=0,
            grid=(B, N // TR),
            in_specs=[
                pl.BlockSpec((1, TR, dim), lambda b, r: (b, r, 0)),        # x
                pl.BlockSpec((inner, dim), lambda b, r: (0, 0)),           # Wq*scale
                pl.BlockSpec((inner, dim), lambda b, r: (0, 0)),           # Wk
            ],
            out_specs=[
                pl.BlockSpec((1, heads, TR, dim_head), lambda b, r: (b, 0, r, 0)),
                pl.BlockSpec((1, heads, dim_head, TR), lambda b, r: (b, 0, 0, r)),
                pl.BlockSpec((1, heads, TR, dv), lambda b, r: (b, 0, r, 0)),
            ],
        ),
        compiler_params=pltpu.CompilerParams(
            dimension_semantics=("parallel", "parallel"),
            vmem_limit_bytes=vmem_limit),
    )(xb, wq_b, wk_b)

    # ---------------- pass 2: flash-style attention with ALiBi ---------------
    out = pl.pallas_call(
        _make_attn_kernel(heads, dv),
        out_shape=jax.ShapeDtypeStruct((B, N, dim), jnp.float32),
        grid_spec=pltpu.PrefetchScalarGridSpec(
            num_scalar_prefetch=0,
            grid=(B, N // TQ, N // TK),
            in_specs=[
                pl.BlockSpec((1, heads, TQ, dim_head), lambda b, qi, ki: (b, 0, qi, 0)),
                pl.BlockSpec((1, heads, dim_head, TK), lambda b, qi, ki: (b, 0, 0, ki)),
                pl.BlockSpec((1, heads, TK, dv), lambda b, qi, ki: (b, 0, ki, 0)),
                pl.BlockSpec((1, TQ, 1), lambda b, qi, ki: (b, qi, 0)),    # pos (q)
                pl.BlockSpec((1, 1, TK), lambda b, qi, ki: (b, 0, ki)),    # pos (k)
                pl.BlockSpec((heads, 1, 1), lambda b, qi, ki: (0, 0, 0)),  # slopes
            ],
            out_specs=pl.BlockSpec((1, TQ, dim), lambda b, qi, ki: (b, qi, 0)),
            scratch_shapes=[
                pltpu.VMEM((heads, TQ, 1), jnp.float32),   # running max
                pltpu.VMEM((heads, TQ, 1), jnp.float32),   # running denom
                pltpu.VMEM((heads, TQ, dv), jnp.float32),  # un-normalized acc
            ],
        ),
        compiler_params=pltpu.CompilerParams(
            dimension_semantics=("parallel", "parallel", "arbitrary"),
            vmem_limit_bytes=vmem_limit),
    )(qh, kh, vh, pos_q, pos_k, slopes3)
    return out


def reference(x, positions, wq, wk, slopes, heads, dim_head):
    """Pure-JAX reference mirroring the kernel's bf16 operand precision."""
    B, N, dim = x.shape
    dv = dim // heads
    scale = dim_head ** -0.5
    xf = x.astype(jnp.bfloat16).astype(jnp.float32)
    wqf = (wq * scale).astype(jnp.bfloat16).astype(jnp.float32)
    wkf = wk.astype(jnp.bfloat16).astype(jnp.float32)
    q = (xf @ wqf.T).astype(jnp.bfloat16).astype(jnp.float32)
    k = (xf @ wkf.T).astype(jnp.bfloat16).astype(jnp.float32)
    q = q.reshape(B, N, heads, dim_head).transpose(0, 2, 1, 3)
    k = k.reshape(B, N, heads, dim_head).transpose(0, 2, 1, 3)
    v = xf.reshape(B, N, heads, dv).transpose(0, 2, 1, 3)
    dots = jnp.einsum('bhnd,bhmd->bhnm', q, k)
    p = positions.astype(jnp.float32)
    rel = -jnp.abs(p[:, None, :] - p[:, :, None])
    dots = dots + slopes[None, :, None, None] * rel[:, None, :, :]
    attn = jax.nn.softmax(dots, axis=-1)
    attn = attn.astype(jnp.bfloat16).astype(jnp.float32)
    out = jnp.einsum('bhnm,bhmd->bhnd', attn, v)
    return out.transpose(0, 2, 1, 3).reshape(B, N, dim)


if __name__ == "__main__":
    B, N, dim = 2, 8, 32
    heads, dim_head = 4, 16
    inner = heads * dim_head

    key = jax.random.PRNGKey(0)
    kx, kp, kq, kk = jax.random.split(key, 4)
    x = jax.random.normal(kx, (B, N, dim), jnp.float32)
    positions = jax.random.randint(kp, (B, N), 0, 32).astype(jnp.float32)
    # nn.Linear(dim, inner_dim, bias=False) weights in torch (out, in) layout.
    wq = jax.random.normal(kq, (inner, dim), jnp.float32) * (dim ** -0.5)
    wk = jax.random.normal(kk, (inner, dim), jnp.float32) * (dim ** -0.5)
    slopes = jnp.asarray(get_slopes(heads), jnp.float32)

    out = attention_positional_bias(x, positions, wq, wk, slopes, heads, dim_head)
    out = jax.block_until_ready(out)

    ref = reference(x, positions, wq, wk, slopes, heads, dim_head)
    assert out.shape == (B, N, dim)
    max_err = float(jnp.max(jnp.abs(out - ref)))
    assert jnp.allclose(out, ref, atol=2e-2, rtol=2e-2), max_err
    print("KERNEL_OK")
</pallas_src>

<mosaic_0001>
module attributes {stable_mosaic.version = 11 : i64} {
  func.func @kernel(%arg0: i32, %arg1: i32, %arg2: memref<1x8x32xbf16, #tpu.memory_space<vmem>>, %arg3: memref<64x32xbf16, #tpu.memory_space<vmem>>, %arg4: memref<64x32xbf16, #tpu.memory_space<vmem>>, %arg5: memref<1x4x8x16xbf16, #tpu.memory_space<vmem>>, %arg6: memref<1x4x16x8xbf16, #tpu.memory_space<vmem>>, %arg7: memref<1x4x8x8xbf16, #tpu.memory_space<vmem>>) attributes {dimension_semantics = [#tpu.dimension_semantics<parallel>, #tpu.dimension_semantics<parallel>], iteration_bounds = array<i64: 2, 1>, scalar_prefetch = 0 : i64, scratch_operands = 0 : i64, tpu.core_type = #tpu.core_type<tc>, window_params = [{transform_indices = @transform_0, window_bounds = array<i64: 1, 8, 32>}, {pipeline_mode = #tpu.pipeline_mode<synchronous>, transform_indices = @transform_1, window_bounds = array<i64: 64, 32>}, {pipeline_mode = #tpu.pipeline_mode<synchronous>, transform_indices = @transform_2, window_bounds = array<i64: 64, 32>}, {transform_indices = @transform_3, window_bounds = array<i64: 1, 4, 8, 16>}, {transform_indices = @transform_4, window_bounds = array<i64: 1, 4, 16, 8>}, {transform_indices = @transform_5, window_bounds = array<i64: 1, 4, 8, 8>}]} {
    %c0 = arith.constant 0 : index
    %c0_0 = arith.constant 0 : index
    %c0_1 = arith.constant 0 : index
    %0 = vector.load %arg2[%c0, %c0_0, %c0_1] : memref<1x8x32xbf16, #tpu.memory_space<vmem>>, vector<1x8x32xbf16>
    %1 = vector.shape_cast %0 : vector<1x8x32xbf16> to vector<8x32xbf16>
    %c0_2 = arith.constant 0 : index
    %c0_3 = arith.constant 0 : index
    %2 = vector.load %arg3[%c0_2, %c0_3] : memref<64x32xbf16, #tpu.memory_space<vmem>>, vector<64x32xbf16>
    %cst = arith.constant dense<0.000000e+00> : vector<64x8xf32>
    %3 = tpu.matmul %2, %1, %cst {dimension_numbers = #tpu.dot_dimension_numbers<[1], [1], [0], [0], [0, 0, 1, 0], [], []>} : vector<64x32xbf16>, vector<8x32xbf16>, vector<64x8xf32> -> vector<64x8xf32>
    %c0_4 = arith.constant 0 : index
    %c0_5 = arith.constant 0 : index
    %4 = vector.load %arg4[%c0_4, %c0_5] : memref<64x32xbf16, #tpu.memory_space<vmem>>, vector<64x32xbf16>
    %cst_6 = arith.constant dense<0.000000e+00> : vector<64x8xf32>
    %5 = tpu.matmul %4, %1, %cst_6 {dimension_numbers = #tpu.dot_dimension_numbers<[1], [1], [0], [0], [0, 0, 1, 0], [], []>} : vector<64x32xbf16>, vector<8x32xbf16>, vector<64x8xf32> -> vector<64x8xf32>
    %6 = vector.shape_cast %3 : vector<64x8xf32> to vector<4x16x8xf32>
    %7 = tpu.transpose %6, [0, 2, 1] : vector<4x16x8xf32> -> vector<4x8x16xf32>
    %8 = arith.truncf %7 : vector<4x8x16xf32> to vector<4x8x16xbf16>
    %c0_7 = arith.constant 0 : index
    %c0_8 = arith.constant 0 : index
    %c0_9 = arith.constant 0 : index
    %c0_10 = arith.constant 0 : index
    %9 = vector.load %arg5[%c0_7, %c0_8, %c0_9, %c0_10] : memref<1x4x8x16xbf16, #tpu.memory_space<vmem>>, vector<1x4x8x16xbf16>
    %10 = vector.shape_cast %9 : vector<1x4x8x16xbf16> to vector<4x8x16xbf16>
    %11 = vector.shape_cast %8 : vector<4x8x16xbf16> to vector<1x4x8x16xbf16>
    tpu.vector_store %arg5[%c0_7, %c0_8, %c0_9, %c0_10], %11 {strides = array<i32>} : memref<1x4x8x16xbf16, #tpu.memory_space<vmem>>, vector<1x4x8x16xbf16>,
    %12 = vector.shape_cast %5 : vector<64x8xf32> to vector<4x16x8xf32>
    %13 = arith.truncf %12 : vector<4x16x8xf32> to vector<4x16x8xbf16>
    %c0_11 = arith.constant 0 : index
    %c0_12 = arith.constant 0 : index
    %c0_13 = arith.constant 0 : index
    %c0_14 = arith.constant 0 : index
    %14 = vector.load %arg6[%c0_11, %c0_12, %c0_13, %c0_14] : memref<1x4x16x8xbf16, #tpu.memory_space<vmem>>, vector<1x4x16x8xbf16>
    %15 = vector.shape_cast %14 : vector<1x4x16x8xbf16> to vector<4x16x8xbf16>
    %16 = vector.shape_cast %13 : vector<4x16x8xbf16> to vector<1x4x16x8xbf16>
    tpu.vector_store %arg6[%c0_11, %c0_12, %c0_13, %c0_14], %16 {strides = array<i32>} : memref<1x4x16x8xbf16, #tpu.memory_space<vmem>>, vector<1x4x16x8xbf16>,
    %17 = vector.extract_strided_slice %1 {offsets = [0, 0], sizes = [8, 8], strides = [1, 1]} : vector<8x32xbf16> to vector<8x8xbf16>
    %c0_15 = arith.constant 0 : index
    %c0_16 = arith.constant 0 : index
    %c0_17 = arith.constant 0 : index
    %c0_18 = arith.constant 0 : index
    %18 = vector.load %arg7[%c0_15, %c0_16, %c0_17, %c0_18] : memref<1x4x8x8xbf16, #tpu.memory_space<vmem>>, vector<1x1x8x8xbf16>
    %19 = vector.shape_cast %18 : vector<1x1x8x8xbf16> to vector<8x8xbf16>
    %20 = vector.shape_cast %17 : vector<8x8xbf16> to vector<1x1x8x8xbf16>
    tpu.vector_store %arg7[%c0_15, %c0_16, %c0_17, %c0_18], %20 {strides = array<i32>} : memref<1x4x8x8xbf16, #tpu.memory_space<vmem>>, vector<1x1x8x8xbf16>,
    %21 = vector.extract_strided_slice %1 {offsets = [0, 8], sizes = [8, 8], strides = [1, 1]} : vector<8x32xbf16> to vector<8x8xbf16>
    %c0_19 = arith.constant 0 : index
    %c1 = arith.constant 1 : index
    %c0_20 = arith.constant 0 : index
    %c0_21 = arith.constant 0 : index
    %22 = vector.load %arg7[%c0_19, %c1, %c0_20, %c0_21] : memref<1x4x8x8xbf16, #tpu.memory_space<vmem>>, vector<1x1x8x8xbf16>
    %23 = vector.shape_cast %22 : vector<1x1x8x8xbf16> to vector<8x8xbf16>
    %24 = vector.shape_cast %21 : vector<8x8xbf16> to vector<1x1x8x8xbf16>
    tpu.vector_store %arg7[%c0_19, %c1, %c0_20, %c0_21], %24 {strides = array<i32>} : memref<1x4x8x8xbf16, #tpu.memory_space<vmem>>, vector<1x1x8x8xbf16>,
    %25 = vector.extract_strided_slice %1 {offsets = [0, 16], sizes = [8, 8], strides = [1, 1]} : vector<8x32xbf16> to vector<8x8xbf16>
    %c0_22 = arith.constant 0 : index
    %c2 = arith.constant 2 : index
    %c0_23 = arith.constant 0 : index
    %c0_24 = arith.constant 0 : index
    %26 = vector.load %arg7[%c0_22, %c2, %c0_23, %c0_24] : memref<1x4x8x8xbf16, #tpu.memory_space<vmem>>, vector<1x1x8x8xbf16>
    %27 = vector.shape_cast %26 : vector<1x1x8x8xbf16> to vector<8x8xbf16>
    %28 = vector.shape_cast %25 : vector<8x8xbf16> to vector<1x1x8x8xbf16>
    tpu.vector_store %arg7[%c0_22, %c2, %c0_23, %c0_24], %28 {strides = array<i32>} : memref<1x4x8x8xbf16, #tpu.memory_space<vmem>>, vector<1x1x8x8xbf16>,
    %29 = vector.extract_strided_slice %1 {offsets = [0, 24], sizes = [8, 8], strides = [1, 1]} : vector<8x32xbf16> to vector<8x8xbf16>
    %c0_25 = arith.constant 0 : index
    %c3 = arith.constant 3 : index
    %c0_26 = arith.constant 0 : index
    %c0_27 = arith.constant 0 : index
    %30 = vector.load %arg7[%c0_25, %c3, %c0_26, %c0_27] : memref<1x4x8x8xbf16, #tpu.memory_space<vmem>>, vector<1x1x8x8xbf16>
    %31 = vector.shape_cast %30 : vector<1x1x8x8xbf16> to vector<8x8xbf16>
    %32 = vector.shape_cast %29 : vector<8x8xbf16> to vector<1x1x8x8xbf16>
    tpu.vector_store %arg7[%c0_25, %c3, %c0_26, %c0_27], %32 {strides = array<i32>} : memref<1x4x8x8xbf16, #tpu.memory_space<vmem>>, vector<1x1x8x8xbf16>,
    return
  }
  func.func @transform_0(%arg0: i32, %arg1: i32) -> (i32, i32, i32) {
    %c0_i32 = arith.constant 0 : i32
    %c0_i32_0 = arith.constant 0 : i32
    return %arg0, %arg1, %c0_i32 : i32, i32, i32
  }
  func.func @transform_1(%arg0: i32, %arg1: i32) -> (i32, i32) {
    %c0_i32 = arith.constant 0 : i32
    %c0_i32_0 = arith.constant 0 : i32
    %c0_i32_1 = arith.constant 0 : i32
    return %c0_i32, %c0_i32_0 : i32, i32
  }
  func.func @transform_2(%arg0: i32, %arg1: i32) -> (i32, i32) {
    %c0_i32 = arith.constant 0 : i32
    %c0_i32_0 = arith.constant 0 : i32
    %c0_i32_1 = arith.constant 0 : i32
    return %c0_i32, %c0_i32_0 : i32, i32
  }
  func.func @transform_3(%arg0: i32, %arg1: i32) -> (i32, i32, i32, i32) {
    %c0_i32 = arith.constant 0 : i32
    %c0_i32_0 = arith.constant 0 : i32
    %c0_i32_1 = arith.constant 0 : i32
    return %arg0, %c0_i32, %arg1, %c0_i32_0 : i32, i32, i32, i32
  }
  func.func @transform_4(%arg0: i32, %arg1: i32) -> (i32, i32, i32, i32) {
    %c0_i32 = arith.constant 0 : i32
    %c0_i32_0 = arith.constant 0 : i32
    %c0_i32_1 = arith.constant 0 : i32
    return %arg0, %c0_i32, %c0_i32_0, %arg1 : i32, i32, i32, i32
  }
  func.func @transform_5(%arg0: i32, %arg1: i32) -> (i32, i32, i32, i32) {
    %c0_i32 = arith.constant 0 : i32
    %c0_i32_0 = arith.constant 0 : i32
    %c0_i32_1 = arith.constant 0 : i32
    return %arg0, %c0_i32, %arg1, %c0_i32_0 : i32, i32, i32, i32
  }
}

</mosaic_0001>

<llo_original>
// kernel: tpu_custom_call.1
$region0: #{tpu_custom_call.1}
  #allocation0 [shape = 'u32[]', space=smem, size = 0x4, offset = 0x4, fixed_abs, tag = 'smem constant byte address 0x4 - core index']
  #allocation1 [shape = 'u32[144,128]{1,0:T(1,128)}', space=vmem, size = 0x12000, scoped, tag = 'internal scratch']
  %s0 = inlined_call_operand.vmem [shape: bf16[2,8,32], index: 0, kind: input, shape index: {}]
  %s1 = inlined_call_operand.vmem [shape: bf16[64,32], index: 1, kind: input, shape index: {}]
  %s2 = inlined_call_operand.vmem [shape: bf16[64,32], index: 2, kind: input, shape index: {}]
  %s3 = inlined_call_operand.hbm [shape: bf16[2,4,8,16], index: 3, kind: output, shape index: {0}]
  %s4 = inlined_call_operand.vmem [shape: bf16[2,4,16,8], index: 4, kind: output, shape index: {1}]
  %s5 = inlined_call_operand.hbm [shape: bf16[2,4,8,8], index: 5, kind: output, shape index: {2}]
  %6 = xla_tuple %s3, %s4, %s5
  %s7 = sld [smem:[#allocation0]]
  $region61: #{tpu_custom_call.1} parent=0
    _
  %s9 = ssub.s32 1, %s7
  %s10 = scalar_select 0, %s9, %s7
  $region1: #{tpu_custom_call.1} parent=0
    #allocation2 [shape = 'u8[16384]{0}', space=vmem, size = 0x4000, scoped, tag = 'output window, operand 0']
    #allocation3 [shape = 's32[2]{0}', space=sflag, size = 0x8, scoped, tag = 'scoped memory for tpu_custom_call.1']
    #allocation4 [shape = 'u8[16384]{0}', space=vmem, size = 0x4000, scoped, tag = 'output window, operand 2']
    #allocation5 [shape = 's32[2]{0}', space=sflag, size = 0x8, scoped, tag = 'scoped memory for tpu_custom_call.1']
    %11 = vsyncpa [#allocation3], 0
    %s12 = scalar_lea.sflag [#allocation3], 1
    %13 = vsyncpa %s12, 0
    %14 = vsyncpa [#allocation5], 0
    %s15 = scalar_lea.sflag [#allocation5], 1
    %16 = vsyncpa %s15, 0
    loop: start=0, step=1, limit=4
    $region2: #{tpu_custom_call.1} parent=1 // loop_pre_header
      _
    $region3: #{tpu_custom_call.1} parent=1 // loop_header
      %s18 = sphi 0, %s22
      %p19 = scmp.ge.s32.totalorder %s18, 4
      %s25 = sphi 0, %s37
      %s26 = sphi 0, %s33
      %s27 = sphi 0, %s25
      %s28 = sphi 0, %s26
      %s29 = sphi 0, %s27
      %s30 = sphi 0, %s28
      %s42 = sphi 0, %s44
      %s45 = sphi 0, %s42
      %s46 = sphi 0, %s45
      %s62 = sphi 0, %s46
      %s66 = sphi 0, %s66
      %s68 = sphi 0, %s66
      %s69 = sphi 0, %s68
      %s83 = sphi 0, %s69
      %s87 = sphi 0, %s87
      %s89 = sphi 0, %s87
      %s90 = sphi 0, %s89
      %s104 = sphi 0, %s90
      %s112 = sphi 0, %s114
      %s115 = sphi 0, %s112
      %s116 = sphi 0, %s115
      %s132 = sphi 0, %s116
      %s140 = sphi 0, %s142
      %s143 = sphi 0, %s140
      %s144 = sphi 0, %s143
      %s160 = sphi 0, %s144
      %s168 = sphi 0, %s170
      %s171 = sphi 0, %s168
      %s172 = sphi 0, %s171
      %s188 = sphi 0, %s172
    $region4: #{tpu_custom_call.1} parent=1 // loop_header_branch
      %21 = sbr.rel (%p19) target = $region8
    $region5: #{tpu_custom_call.1} parent=1 // loop_body
      %s23 = ssub.s32 %s18, 1
      %s24 = ssub.s32 %s18, 2
      %s31 = sadd.s32 1, %s26
      %p32 = scmp.ge.s32.totalorder %s31, 1
      %s33 = scalar_select %p32, 0, %s31
      %s34 = sadd.s32 1, %s25
      %s35 = scalar_select %p32, %s34, %s25
      %p36 = scmp.ge.s32.totalorder %s35, 2
      %s37 = scalar_select %p36, 0, %s35
      %s38 = ssub.s32 %s25, %s37
      %s39 = ssub.s32 %s26, %s33
      %s40 = sor.u32 %s38, %s39
      %p41 = scmp.eq.s32.totalorder %s40, 0
      %s43 = sadd.s32 %s42, 1
      %s44 = scalar_select %p41, %s42, %s43
      %p47 = pneg %p41
      %p48 = scmp.eq.s32.totalorder %s18, 1
      %p49 = por %p47, %p48
      %p50 = scmp.ne.s32.totalorder %s42, %s45
      %p51 = scmp.eq.s32.totalorder %s18, 0
      %p52 = por %p50, %p51
      %p53 = scmp.ne.s32.totalorder %s42, %s45
      %p54 = scmp.eq.s32.totalorder %s23, 1
      %p55 = por %p53, %p54
      %p56 = scmp.ne.s32.totalorder %s45, %s46
      %p57 = scmp.eq.s32.totalorder %s23, 0
      %p58 = por %p56, %p57
      %p59 = scmp.ne.s32.totalorder %s45, %s46
      %p60 = scmp.eq.s32.totalorder %s24, 1
      %p61 = por %p59, %p60
      %p63 = scmp.ne.s32.totalorder %s46, %s62
      %p64 = scmp.eq.s32.totalorder %s24, 0
      %p65 = por %p63, %p64
      %s67 = sadd.s32 %s66, 1
      %p70 = scmp.eq.s32.totalorder %s18, 1
      %p71 = scmp.ne.s32.totalorder %s66, %s68
      %p72 = scmp.eq.s32.totalorder %s18, 0
      %p73 = por %p71, %p72
      %p74 = scmp.ne.s32.totalorder %s66, %s68
      %p75 = scmp.eq.s32.totalorder %s23, 1
      %p76 = por %p74, %p75
      %p77 = scmp.ne.s32.totalorder %s68, %s69
      %p78 = scmp.eq.s32.totalorder %s23, 0
      %p79 = por %p77, %p78
      %p80 = scmp.ne.s32.totalorder %s68, %s69
      %p81 = scmp.eq.s32.totalorder %s24, 1
      %p82 = por %p80, %p81
      %p84 = scmp.ne.s32.totalorder %s69, %s83
      %p85 = scmp.eq.s32.totalorder %s24, 0
      %p86 = por %p84, %p85
      %s88 = sadd.s32 %s87, 1
      %p91 = scmp.eq.s32.totalorder %s18, 1
      %p92 = scmp.ne.s32.totalorder %s87, %s89
      %p93 = scmp.eq.s32.totalorder %s18, 0
      %p94 = por %p92, %p93
      %p95 = scmp.ne.s32.totalorder %s87, %s89
      %p96 = scmp.eq.s32.totalorder %s23, 1
      %p97 = por %p95, %p96
      %p98 = scmp.ne.s32.totalorder %s89, %s90
      %p99 = scmp.eq.s32.totalorder %s23, 0
      %p100 = por %p98, %p99
      %p101 = scmp.ne.s32.totalorder %s89, %s90
      %p102 = scmp.eq.s32.totalorder %s24, 1
      %p103 = por %p101, %p102
      %p105 = scmp.ne.s32.totalorder %s90, %s104
      %p106 = scmp.eq.s32.totalorder %s24, 0
      %p107 = por %p105, %p106
      %s108 = ssub.s32 %s25, %s37
      %s109 = ssub.s32 %s26, %s33
      %s110 = sor.u32 %s108, %s109
      %p111 = scmp.eq.s32.totalorder %s110, 0
      %s113 = sadd.s32 %s112, 1
      %s114 = scalar_select %p111, %s112, %s113
      %p117 = pneg %p111
      %p118 = scmp.eq.s32.totalorder %s18, 1
      %p119 = por %p117, %p118
      %p120 = scmp.ne.s32.totalorder %s112, %s115
      %p121 = scmp.eq.s32.totalorder %s18, 0
      %p122 = por %p120, %p121
      %p123 = scmp.ne.s32.totalorder %s112, %s115
      %p124 = scmp.eq.s32.totalorder %s23, 1
      %p125 = por %p123, %p124
      %p126 = scmp.ne.s32.totalorder %s115, %s116
      %p127 = scmp.eq.s32.totalorder %s23, 0
      %p128 = por %p126, %p127
      %p129 = scmp.ne.s32.totalorder %s115, %s116
      %p130 = scmp.eq.s32.totalorder %s24, 1
      %p131 = por %p129, %p130
      %p133 = scmp.ne.s32.totalorder %s116, %s132
      %p134 = scmp.eq.s32.totalorder %s24, 0
      %p135 = por %p133, %p134
      %s136 = ssub.s32 %s25, %s37
      %s137 = ssub.s32 %s26, %s33
      %s138 = sor.u32 %s136, %s137
      %p139 = scmp.eq.s32.totalorder %s138, 0
      %s141 = sadd.s32 %s140, 1
      %s142 = scalar_select %p139, %s140, %s141
      %p145 = pneg %p139
      %p146 = scmp.eq.s32.totalorder %s18, 1
      %p147 = por %p145, %p146
      %p148 = scmp.ne.s32.totalorder %s140, %s143
      %p149 = scmp.eq.s32.totalorder %s18, 0
      %p150 = por %p148, %p149
      %p151 = scmp.ne.s32.totalorder %s140, %s143
      %p152 = scmp.eq.s32.totalorder %s23, 1
      %p153 = por %p151, %p152
      %p154 = scmp.ne.s32.totalorder %s143, %s144
      %p155 = scmp.eq.s32.totalorder %s23, 0
      %p156 = por %p154, %p155
      %p157 = scmp.ne.s32.totalorder %s143, %s144
      %p158 = scmp.eq.s32.totalorder %s24, 1
      %p159 = por %p157, %p158
      %p161 = scmp.ne.s32.totalorder %s144, %s160
      %p162 = scmp.eq.s32.totalorder %s24, 0
      %p163 = por %p161, %p162
      %s164 = ssub.s32 %s25, %s37
      %s165 = ssub.s32 %s26, %s33
      %s166 = sor.u32 %s164, %s165
      %p167 = scmp.eq.s32.totalorder %s166, 0
      %s169 = sadd.s32 %s168, 1
      %s170 = scalar_select %p167, %s168, %s169
      %p173 = pneg %p167
      %p174 = scmp.eq.s32.totalorder %s18, 1
      %p175 = por %p173, %p174
      %p176 = scmp.ne.s32.totalorder %s168, %s171
      %p177 = scmp.eq.s32.totalorder %s18, 0
      %p178 = por %p176, %p177
      %p179 = scmp.ne.s32.totalorder %s168, %s171
      %p180 = scmp.eq.s32.totalorder %s23, 1
      %p181 = por %p179, %p180
      %p182 = scmp.ne.s32.totalorder %s171, %s172
      %p183 = scmp.eq.s32.totalorder %s23, 0
      %p184 = por %p182, %p183
      %p185 = scmp.ne.s32.totalorder %s171, %s172
      %p186 = scmp.eq.s32.totalorder %s24, 1
      %p187 = por %p185, %p186
      %p189 = scmp.ne.s32.totalorder %s172, %s188
      %p190 = scmp.eq.s32.totalorder %s24, 0
      %p191 = por %p189, %p190
      %p192 = scmp.le.s32.totalorder 1, %s18
      %p193 = scmp.lt.s32.totalorder %s18, 3
      %p194 = pnand %p192, %p193
      %p195 = pneg %p194
      // Predicated region
      $region9: #{tpu_custom_call.1} parent=5 // pred_check
        _
      $region10: #{tpu_custom_call.1} parent=5 // pred_check_branch
        %197 = sbr.rel (%p194) target = $region12
      $region11: #{tpu_custom_call.1} parent=5 // pred_region
        %s198 = ssub.s32 %s18, 1
        // Predicated region
        $region13: #{tpu_custom_call.1} parent=11 // pred_check
          %p199 = pneg %p79
        $region14: #{tpu_custom_call.1} parent=11 // pred_check_branch
          %201 = sbr.rel (%p199) target = $region16
        $region15: #{tpu_custom_call.1} parent=11 // pred_region
          _
        $region16: #{tpu_custom_call.1} parent=11 // pred_fallthru
          _
        // Predicated region
        $region17: #{tpu_custom_call.1} parent=11 // pred_check
          %p202 = pneg %p100
        $region18: #{tpu_custom_call.1} parent=11 // pred_check_branch
          %204 = sbr.rel (%p202) target = $region20
        $region19: #{tpu_custom_call.1} parent=11 // pred_region
          _
        $region20: #{tpu_custom_call.1} parent=11 // pred_fallthru
          _
      $region12: #{tpu_custom_call.1} parent=5 // pred_fallthru
        _
      %p205 = scmp.lt.s32.totalorder %s18, 2
      // Predicated region
      $region21: #{tpu_custom_call.1} parent=5 // pred_check
        %p206 = pneg %p205
      $region22: #{tpu_custom_call.1} parent=5 // pred_check_branch
        %208 = sbr.rel (%p206) target = $region24
      $region23: #{tpu_custom_call.1} parent=5 // pred_region
        // Predicated region
        $region25: #{tpu_custom_call.1} parent=23 // pred_check
          %p209 = pneg %p52
        $region26: #{tpu_custom_call.1} parent=23 // pred_check_branch
          %211 = sbr.rel (%p209) target = $region28
        $region27: #{tpu_custom_call.1} parent=23 // pred_region
          %p212 = scmp.lt.s32.totalorder %s25, 1
          %s213 = scalar_select %p212, %s25, 1
          %p214 = scmp.lt.s32.totalorder %s26, 0
          %s215 = scalar_select %p214, %s26, 0
          %s216 = sadd.s32 %s215, %s213
          %s217 = smul.addr %s216, 4
          %s218 = scalar_lea.vmem %s0, %s217
        $region28: #{tpu_custom_call.1} parent=23 // pred_fallthru
          _
      $region24: #{tpu_custom_call.1} parent=5 // pred_fallthru
        _
      %p219 = scmp.le.s32.totalorder 1, %s18
      %p220 = scmp.lt.s32.totalorder %s18, 3
      %p221 = pnand %p219, %p220
      %p222 = pneg %p221
      // Predicated region
      $region29: #{tpu_custom_call.1} parent=5 // pred_check
        _
      $region30: #{tpu_custom_call.1} parent=5 // pred_check_branch
        %224 = sbr.rel (%p221) target = $region32
      $region31: #{tpu_custom_call.1} parent=5 // pred_region
        %s225 = ssub.s32 %s18, 1
        %p226 = scmp.lt.s32.totalorder %s27, 1
        %s227 = scalar_select %p226, %s27, 1
        %p228 = scmp.lt.s32.totalorder %s28, 0
        %s229 = scalar_select %p228, %s28, 0
        %s230 = sadd.s32 %s229, %s227
        %s231 = smul.addr %s230, 4
        %s232 = scalar_lea.vmem %s0, %s231
        %p233 = pneg %p58
        %p234 = pneg %p55
        %p235 = pneg %p79
        %p236 = pneg %p76
        %p237 = pneg %p100
        %p238 = pneg %p97
        %p239 = pneg %p128
        %p240 = pneg %p125
        %s241 = sand.u32 %s115, 1
        %s242 = scalar_lea.sflag [#allocation3], %s241
        %s243 = sand.u32 %s115, 1
        %s244 = smul.addr %s243, 16
        %s245 = scalar_lea.vmem [#allocation2], %s244
        %p246 = pneg %p156
        %p247 = pneg %p153
        %p248 = scmp.lt.s32.totalorder %s27, 1
        %s249 = scalar_select %p248, %s27, 1
        %p250 = scmp.lt.s32.totalorder %s28, 0
        %s251 = scalar_select %p250, %s28, 0
        %s252 = smul.addr %s249, 8
        %s253 = sadd.s32 %s251, %s252
        %s254 = smul.addr %s253, 4
        %s255 = scalar_lea.vmem %s4, %s254
        %p256 = pneg %p184
        %p257 = pneg %p181
        %s258 = sand.u32 %s171, 1
        %s259 = scalar_lea.sflag [#allocation5], %s258
        %s260 = sand.u32 %s171, 1
        %s261 = smul.addr %s260, 16
        %s262 = scalar_lea.vmem [#allocation4], %s261
        %p263 = scmp.lt.s32.totalorder %s27, 1
        %s264 = scalar_select %p263, %s27, 1
        %p265 = scmp.lt.s32.totalorder %s28, 0
        %s266 = scalar_select %p265, %s28, 0
        %s267 = sadd.s32 %s266, %s264
        %s268 = smul.addr %s267, 4
        %s269 = scalar_lea.vmem %s0, %s268
        %p270 = scmp.lt.s32.totalorder %s27, 1
        %s271 = scalar_select %p270, %s27, 1
        %p272 = scmp.lt.s32.totalorder %s28, 0
        %s273 = scalar_select %p272, %s28, 0
        %s274 = smul.addr %s271, 8
        %s275 = sadd.s32 %s273, %s274
        %s276 = smul.addr %s275, 4
        %s277 = scalar_lea.vmem %s4, %s276
        %v279 = vld [vmem:[%s269] sm:$0xf]
        %v280 = vld [vmem:[%s1] sm:$0xf]
        %v281 = vld [vmem:[%s1 + $0x4] sm:$0xf]
        %v282 = vld [vmem:[%s1 + $0x8] sm:$0xf]
        %v283 = vld [vmem:[%s1 + $0xc] sm:$0xf]
        %v284 = vld [vmem:[%s1 + $0x10] sm:$0xf]
        %v285 = vld [vmem:[%s1 + $0x14] sm:$0xf]
        %v286 = vld [vmem:[%s1 + $0x18] sm:$0xf]
        %v287 = vld [vmem:[%s1 + $0x1c] sm:$0xf]
        %v296 = vunpack.c.l.b16 %v280
        %v297 = vunpack.c.l.b16 %v281
        %v298 = vunpack.c.l.b16 %v282
        %v299 = vunpack.c.l.b16 %v283
        %v300 = vunpack.c.l.b16 %v284
        %v301 = vunpack.c.l.b16 %v285
        %v302 = vunpack.c.l.b16 %v286
        %v303 = vunpack.c.l.b16 %v287
        %v304 = vpack.c.b16 %v297, %v296
        %v305 = vpack.c.b16 %v299, %v298
        %v306 = vpack.c.b16 %v301, %v300
        %v307 = vpack.c.b16 %v303, %v302
        %vm308 = vcmask 261120
        %v310 = vsel %vm308, %v304, 0
        %v313 = vsel %vm308, %v305, 0
        %v316 = vsel %vm308, %v306, 0
        %v319 = vsel %vm308, %v307, 0
        %v322 = vsel %vm308, %v279, 0
        %324 = vmatprep.subr.bf16.mxu0 0
        %325 = vmatpush1.bf16.xpose.msra.mxu0 0
        %326 = vmatprep.subr.bf16.mxu0 0
        %327 = vmatpush1.bf16.xpose.msra.mxu0 0
        %328 = vmatprep.subr.bf16.mxu0 0
        %329 = vmatpush1.bf16.xpose.msra.mxu0 0
        %330 = vmatprep.subr.bf16.mxu0 0
        %331 = vmatpush1.bf16.xpose.msra.mxu0 0
        %332 = vmatprep.subr.bf16.mxu0 0
        %333 = vmatpush1.bf16.xpose.msra.mxu0 0
        %334 = vmatprep.subr.bf16.mxu0 0
        %335 = vmatpush1.bf16.xpose.msra.mxu0 0
        %336 = vmatprep.subr.bf16.mxu0 0
        %337 = vmatpush1.bf16.xpose.msra.mxu0 0
        %338 = vmatprep.subr.bf16.mxu0 0
        %339 = vmatpush1.bf16.xpose.msra.mxu0 %v322
        %340 = vmatprep.subr.bf16.mxu0 0
        %341 = vmatpush2.bf16.xpose.msra.mxu0 0
        %342 = vmatprep.subr.bf16.mxu0 0
        %343 = vmatpush2.bf16.xpose.msra.mxu0 0
        %344 = vmatprep.subr.bf16.mxu0 0
        %345 = vmatpush2.bf16.xpose.msra.mxu0 0
        %346 = vmatprep.subr.bf16.mxu0 0
        %347 = vmatpush2.bf16.xpose.msra.mxu0 0
        %348 = vmatprep.subr.bf16.mxu0 0
        %349 = vmatpush2.bf16.xpose.msra.mxu0 0
        %350 = vmatprep.subr.bf16.mxu0 0
        %351 = vmatpush2.bf16.xpose.msra.mxu0 0
        %352 = vmatprep.subr.bf16.mxu0 0
        %353 = vmatpush2.bf16.xpose.msra.mxu0 0
        %354 = vmatprep.subr.bf16.mxu0 0
        %355 = vmatpush2.bf16.xpose.msra.mxu0 0
        %356 = vmatprep.mubr.bf16.mxu0 0
        %357 = vmatmul.mubr.bf16.gmra.mxu0 %v310
        %v358 = vpop.f32.mrf.mxu0
        %v359 = vadd.f32 0.0, %v358
        %v360 = vpop.f32.mrf.mxu0
        %v361 = vpop.f32.mrf.mxu0
        %v362 = vadd.f32 0.0, %v361
        %v363 = vpop.f32.mrf.mxu0
        %364 = vmatprep.mubr.bf16.mxu0 0
        %365 = vmatmul.mubr.bf16.gmra.mxu0 %v313
        %v366 = vpop.f32.mrf.mxu0
        %v367 = vadd.f32 0.0, %v366
        %v368 = vpop.f32.mrf.mxu0
        %v369 = vpop.f32.mrf.mxu0
        %v370 = vadd.f32 0.0, %v369
        %v371 = vpop.f32.mrf.mxu0
        %372 = vmatprep.mubr.bf16.mxu0 0
        %373 = vmatmul.mubr.bf16.gmra.mxu0 %v316
        %v374 = vpop.f32.mrf.mxu0
        %v375 = vadd.f32 0.0, %v374
        %v376 = vpop.f32.mrf.mxu0
        %v377 = vpop.f32.mrf.mxu0
        %v378 = vadd.f32 0.0, %v377
        %v379 = vpop.f32.mrf.mxu0
        %380 = vmatprep.mubr.bf16.mxu0 0
        %381 = vmatmul.mubr.bf16.gmra.mxu0 %v319
        %v382 = vpop.f32.mrf.mxu0
        %v383 = vadd.f32 0.0, %v382
        %v384 = vpop.f32.mrf.mxu0
        %v385 = vpop.f32.mrf.mxu0
        %v386 = vadd.f32 0.0, %v385
        %v387 = vpop.f32.mrf.mxu0
        %388 = vdwg.mxu0
        %v389 = vld [vmem:[%s2] sm:$0xf]
        %v390 = vld [vmem:[%s2 + $0x4] sm:$0xf]
        %v391 = vld [vmem:[%s2 + $0x8] sm:$0xf]
        %v392 = vld [vmem:[%s2 + $0xc] sm:$0xf]
        %v393 = vld [vmem:[%s2 + $0x10] sm:$0xf]
        %v394 = vld [vmem:[%s2 + $0x14] sm:$0xf]
        %v395 = vld [vmem:[%s2 + $0x18] sm:$0xf]
        %v396 = vld [vmem:[%s2 + $0x1c] sm:$0xf]
        %v405 = vunpack.c.l.b16 %v389
        %v406 = vunpack.c.l.b16 %v390
        %v407 = vunpack.c.l.b16 %v391
        %v408 = vunpack.c.l.b16 %v392
        %v409 = vunpack.c.l.b16 %v393
        %v410 = vunpack.c.l.b16 %v394
        %v411 = vunpack.c.l.b16 %v395
        %v412 = vunpack.c.l.b16 %v396
        %v413 = vpack.c.b16 %v406, %v405
        %v414 = vpack.c.b16 %v408, %v407
        %v415 = vpack.c.b16 %v410, %v409
        %v416 = vpack.c.b16 %v412, %v411
        %v418 = vsel %vm308, %v413, 0
        %v421 = vsel %vm308, %v414, 0
        %v424 = vsel %vm308, %v415, 0
        %v427 = vsel %vm308, %v416, 0
        %429 = vmatprep.subr.bf16.mxu0 0
        %430 = vmatpush1.bf16.xpose.msra.mxu0 0
        %431 = vmatprep.subr.bf16.mxu0 0
        %432 = vmatpush1.bf16.xpose.msra.mxu0 0
        %433 = vmatprep.subr.bf16.mxu0 0
        %434 = vmatpush1.bf16.xpose.msra.mxu0 0
        %435 = vmatprep.subr.bf16.mxu0 0
        %436 = vmatpush1.bf16.xpose.msra.mxu0 0
        %437 = vmatprep.subr.bf16.mxu0 0
        %438 = vmatpush1.bf16.xpose.msra.mxu0 0
        %439 = vmatprep.subr.bf16.mxu0 0
        %440 = vmatpush1.bf16.xpose.msra.mxu0 0
        %441 = vmatprep.subr.bf16.mxu0 0
        %442 = vmatpush1.bf16.xpose.msra.mxu0 0
        %443 = vmatprep.subr.bf16.mxu0 0
        %444 = vmatpush1.bf16.xpose.msra.mxu0 %v322
        %445 = vmatprep.subr.bf16.mxu0 0
        %446 = vmatpush2.bf16.xpose.msra.mxu0 0
        %447 = vmatprep.subr.bf16.mxu0 0
        %448 = vmatpush2.bf16.xpose.msra.mxu0 0
        %449 = vmatprep.subr.bf16.mxu0 0
        %450 = vmatpush2.bf16.xpose.msra.mxu0 0
        %451 = vmatprep.subr.bf16.mxu0 0
        %452 = vmatpush2.bf16.xpose.msra.mxu0 0
        %453 = vmatprep.subr.bf16.mxu0 0
        %454 = vmatpush2.bf16.xpose.msra.mxu0 0
        %455 = vmatprep.subr.bf16.mxu0 0
        %456 = vmatpush2.bf16.xpose.msra.mxu0 0
        %457 = vmatprep.subr.bf16.mxu0 0
        %458 = vmatpush2.bf16.xpose.msra.mxu0 0
        %459 = vmatprep.subr.bf16.mxu0 0
        %460 = vmatpush2.bf16.xpose.msra.mxu0 0
        %461 = vmatprep.mubr.bf16.mxu0 0
        %462 = vmatmul.mubr.bf16.gmra.mxu0 %v418
        %v463 = vpop.f32.mrf.mxu0
        %v464 = vadd.f32 0.0, %v463
        %v465 = vpop.f32.mrf.mxu0
        %v466 = vpop.f32.mrf.mxu0
        %v467 = vadd.f32 0.0, %v466
        %v468 = vpop.f32.mrf.mxu0
        %469 = vmatprep.mubr.bf16.mxu0 0
        %470 = vmatmul.mubr.bf16.gmra.mxu0 %v421
        %v471 = vpop.f32.mrf.mxu0
        %v472 = vadd.f32 0.0, %v471
        %v473 = vpop.f32.mrf.mxu0
        %v474 = vpop.f32.mrf.mxu0
        %v475 = vadd.f32 0.0, %v474
        %v476 = vpop.f32.mrf.mxu0
        %477 = vmatprep.mubr.bf16.mxu0 0
        %478 = vmatmul.mubr.bf16.gmra.mxu0 %v424
        %v479 = vpop.f32.mrf.mxu0
        %v480 = vadd.f32 0.0, %v479
        %v481 = vpop.f32.mrf.mxu0
        %v482 = vpop.f32.mrf.mxu0
        %v483 = vadd.f32 0.0, %v482
        %v484 = vpop.f32.mrf.mxu0
        %485 = vmatprep.mubr.bf16.mxu0 0
        %486 = vmatmul.mubr.bf16.gmra.mxu0 %v427
        %v487 = vpop.f32.mrf.mxu0
        %v488 = vadd.f32 0.0, %v487
        %v489 = vpop.f32.mrf.mxu0
        %v490 = vpop.f32.mrf.mxu0
        %v491 = vadd.f32 0.0, %v490
        %v492 = vpop.f32.mrf.mxu0
        %493 = vdwg.mxu0
        %494 = vxpose.xlu0.b32.start [1/16] %v359, 128
        %495 = vxpose.xlu0.b32.cont [2/16] %v362, 128
        %496 = vxpose.xlu0.b32.cont [3/16] 0.0, 128
        %497 = vxpose.xlu0.b32.cont [4/16] 0.0, 128
        %498 = vxpose.xlu0.b32.cont [5/16] 0.0, 128
        %499 = vxpose.xlu0.b32.cont [6/16] 0.0, 128
        %500 = vxpose.xlu0.b32.cont [7/16] 0.0, 128
        %501 = vxpose.xlu0.b32.cont [8/16] 0.0, 128
        %502 = vxpose.xlu0.b32.cont [9/16] 0.0, 128
        %503 = vxpose.xlu0.b32.cont [10/16] 0.0, 128
        %504 = vxpose.xlu0.b32.cont [11/16] 0.0, 128
        %505 = vxpose.xlu0.b32.cont [12/16] 0.0, 128
        %506 = vxpose.xlu0.b32.cont [13/16] 0.0, 128
        %507 = vxpose.xlu0.b32.cont [14/16] 0.0, 128
        %508 = vxpose.xlu0.b32.cont [15/16] 0.0, 128
        %509 = vxpose.xlu0.b32.end [16/16] 0.0, 128
        %v510 = vpop.trf.xlu0
        %v511 = vpop.trf.xlu0
        %v512 = vpop.trf.xlu0
        %v513 = vpop.trf.xlu0
        %v514 = vpop.trf.xlu0
        %v515 = vpop.trf.xlu0
        %v516 = vpop.trf.xlu0
        %v517 = vpop.trf.xlu0
        %v518 = vpop.trf.xlu0
        %v519 = vpop.trf.xlu0
        %v520 = vpop.trf.xlu0
        %v521 = vpop.trf.xlu0
        %v522 = vpop.trf.xlu0
        %v523 = vpop.trf.xlu0
        %v524 = vpop.trf.xlu0
        %v525 = vpop.trf.xlu0
        %526 = vxpose.xlu0.b32.start [1/16] %v367, 128
        %527 = vxpose.xlu0.b32.cont [2/16] %v370, 128
        %528 = vxpose.xlu0.b32.cont [3/16] 0.0, 128
        %529 = vxpose.xlu0.b32.cont [4/16] 0.0, 128
        %530 = vxpose.xlu0.b32.cont [5/16] 0.0, 128
        %531 = vxpose.xlu0.b32.cont [6/16] 0.0, 128
        %532 = vxpose.xlu0.b32.cont [7/16] 0.0, 128
        %533 = vxpose.xlu0.b32.cont [8/16] 0.0, 128
        %534 = vxpose.xlu0.b32.cont [9/16] 0.0, 128
        %535 = vxpose.xlu0.b32.cont [10/16] 0.0, 128
        %536 = vxpose.xlu0.b32.cont [11/16] 0.0, 128
        %537 = vxpose.xlu0.b32.cont [12/16] 0.0, 128
        %538 = vxpose.xlu0.b32.cont [13/16] 0.0, 128
        %539 = vxpose.xlu0.b32.cont [14/16] 0.0, 128
        %540 = vxpose.xlu0.b32.cont [15/16] 0.0, 128
        %541 = vxpose.xlu0.b32.end [16/16] 0.0, 128
        %v542 = vpop.trf.xlu0
        %v543 = vpop.trf.xlu0
        %v544 = vpop.trf.xlu0
        %v545 = vpop.trf.xlu0
        %v546 = vpop.trf.xlu0
        %v547 = vpop.trf.xlu0
        %v548 = vpop.trf.xlu0
        %v549 = vpop.trf.xlu0
        %v550 = vpop.trf.xlu0
        %v551 = vpop.trf.xlu0
        %v552 = vpop.trf.xlu0
        %v553 = vpop.trf.xlu0
        %v554 = vpop.trf.xlu0
        %v555 = vpop.trf.xlu0
        %v556 = vpop.trf.xlu0
        %v557 = vpop.trf.xlu0
        %558 = vxpose.xlu0.b32.start [1/16] %v375, 128
        %559 = vxpose.xlu0.b32.cont [2/16] %v378, 128
        %560 = vxpose.xlu0.b32.cont [3/16] 0.0, 128
        %561 = vxpose.xlu0.b32.cont [4/16] 0.0, 128
        %562 = vxpose.xlu0.b32.cont [5/16] 0.0, 128
        %563 = vxpose.xlu0.b32.cont [6/16] 0.0, 128
        %564 = vxpose.xlu0.b32.cont [7/16] 0.0, 128
        %565 = vxpose.xlu0.b32.cont [8/16] 0.0, 128
        %566 = vxpose.xlu0.b32.cont [9/16] 0.0, 128
        %567 = vxpose.xlu0.b32.cont [10/16] 0.0, 128
        %568 = vxpose.xlu0.b32.cont [11/16] 0.0, 128
        %569 = vxpose.xlu0.b32.cont [12/16] 0.0, 128
        %570 = vxpose.xlu0.b32.cont [13/16] 0.0, 128
        %571 = vxpose.xlu0.b32.cont [14/16] 0.0, 128
        %572 = vxpose.xlu0.b32.cont [15/16] 0.0, 128
        %573 = vxpose.xlu0.b32.end [16/16] 0.0, 128
        %v574 = vpop.trf.xlu0
        %v575 = vpop.trf.xlu0
        %v576 = vpop.trf.xlu0
        %v577 = vpop.trf.xlu0
        %v578 = vpop.trf.xlu0
        %v579 = vpop.trf.xlu0
        %v580 = vpop.trf.xlu0
        %v581 = vpop.trf.xlu0
        %v582 = vpop.trf.xlu0
        %v583 = vpop.trf.xlu0
        %v584 = vpop.trf.xlu0
        %v585 = vpop.trf.xlu0
        %v586 = vpop.trf.xlu0
        %v587 = vpop.trf.xlu0
        %v588 = vpop.trf.xlu0
        %v589 = vpop.trf.xlu0
        %590 = vxpose.xlu0.b32.start [1/16] %v383, 128
        %591 = vxpose.xlu0.b32.cont [2/16] %v386, 128
        %592 = vxpose.xlu0.b32.cont [3/16] 0.0, 128
        %593 = vxpose.xlu0.b32.cont [4/16] 0.0, 128
        %594 = vxpose.xlu0.b32.cont [5/16] 0.0, 128
        %595 = vxpose.xlu0.b32.cont [6/16] 0.0, 128
        %596 = vxpose.xlu0.b32.cont [7/16] 0.0, 128
        %597 = vxpose.xlu0.b32.cont [8/16] 0.0, 128
        %598 = vxpose.xlu0.b32.cont [9/16] 0.0, 128
        %599 = vxpose.xlu0.b32.cont [10/16] 0.0, 128
        %600 = vxpose.xlu0.b32.cont [11/16] 0.0, 128
        %601 = vxpose.xlu0.b32.cont [12/16] 0.0, 128
        %602 = vxpose.xlu0.b32.cont [13/16] 0.0, 128
        %603 = vxpose.xlu0.b32.cont [14/16] 0.0, 128
        %604 = vxpose.xlu0.b32.cont [15/16] 0.0, 128
        %605 = vxpose.xlu0.b32.end [16/16] 0.0, 128
        %v606 = vpop.trf.xlu0
        %v607 = vpop.trf.xlu0
        %v608 = vpop.trf.xlu0
        %v609 = vpop.trf.xlu0
        %v610 = vpop.trf.xlu0
        %v611 = vpop.trf.xlu0
        %v612 = vpop.trf.xlu0
        %v613 = vpop.trf.xlu0
        %v614 = vpop.trf.xlu0
        %v615 = vpop.trf.xlu0
        %v616 = vpop.trf.xlu0
        %v617 = vpop.trf.xlu0
        %v618 = vpop.trf.xlu0
        %v619 = vpop.trf.xlu0
        %v620 = vpop.trf.xlu0
        %v621 = vpop.trf.xlu0
        %v622 = vpack.c.bf16 %v510, %v510
        %v623 = vpack.c.bf16 %v542, %v542
        %v624 = vpack.c.bf16 %v574, %v574
        %v625 = vpack.c.bf16 %v606, %v606
        %vm626 = vcmask 125952
        %627 = vst.msk [vmem:[%s245] sm:$0xf] %vm626, %v622
        %628 = vst.msk [vmem:[%s245 + $0x4] sm:$0xf] %vm626, %v623
        %629 = vst.msk [vmem:[%s245 + $0x8] sm:$0xf] %vm626, %v624
        %630 = vst.msk [vmem:[%s245 + $0xc] sm:$0xf] %vm626, %v625
        %v631 = vpack.c.bf16 %v467, %v464
        %v632 = vpack.c.bf16 %v475, %v472
        %v633 = vpack.c.bf16 %v483, %v480
        %v634 = vpack.c.bf16 %v491, %v488
        %v639 = vunpack.c.l.b16 %v631
        %v640 = vunpack.c.h.b16 %v631
        %v641 = vunpack.c.l.b16 %v632
        %v642 = vunpack.c.h.b16 %v632
        %v643 = vunpack.c.l.b16 %v633
        %v644 = vunpack.c.h.b16 %v633
        %v645 = vunpack.c.l.b16 %v634
        %v646 = vunpack.c.h.b16 %v634
        %v647 = vpack.c.b16 %v639, %v639
        %v648 = vpack.c.b16 %v640, %v640
        %v649 = vpack.c.b16 %v641, %v641
        %v650 = vpack.c.b16 %v642, %v642
        %v651 = vpack.c.b16 %v643, %v643
        %v652 = vpack.c.b16 %v644, %v644
        %v653 = vpack.c.b16 %v645, %v645
        %v654 = vpack.c.b16 %v646, %v646
        %vm663 = vcmask 60416
        %664 = vst.msk [vmem:[%s277] sm:$0xf] %vm663, %v647
        %665 = vst.msk [vmem:[%s277 + $0x4] sm:$0xf] %vm663, %v648
        %666 = vst.msk [vmem:[%s277 + $0x8] sm:$0xf] %vm663, %v649
        %667 = vst.msk [vmem:[%s277 + $0xc] sm:$0xf] %vm663, %v650
        %668 = vst.msk [vmem:[%s277 + $0x10] sm:$0xf] %vm663, %v651
        %669 = vst.msk [vmem:[%s277 + $0x14] sm:$0xf] %vm663, %v652
        %670 = vst.msk [vmem:[%s277 + $0x18] sm:$0xf] %vm663, %v653
        %671 = vst.msk [vmem:[%s277 + $0x1c] sm:$0xf] %vm663, %v654
        %672 = vst.msk [vmem:[%s262] sm:$0xf] %vm663, %v279
        %674 = vrot.lane.b32.xlu0 %v279, 120
        %v675 = vpop.permute.xlu0 %674
        %s677 = scalar_lea.vmem %s262, 4 [#allocation4]
        %678 = vst.msk [vmem:[%s677] sm:$0xf] %vm663, %v675
        %679 = vrot.lane.b32.xlu0 %v279, 112
        %v680 = vpop.permute.xlu0 %679
        %s682 = scalar_lea.vmem %s262, 8 [#allocation4]
        %683 = vst.msk [vmem:[%s682] sm:$0xf] %vm663, %v680
        %684 = vrot.lane.b32.xlu0 %v279, 104
        %v685 = vpop.permute.xlu0 %684
        %s687 = scalar_lea.vmem %s262, 12 [#allocation4]
        %688 = vst.msk [vmem:[%s687] sm:$0xf] %vm663, %v685
        %s689 = sand.u32 %s115, 1
        %s690 = scalar_lea.sflag [#allocation3], %s689
        %s691 = sand.u32 %s115, 1
        %s692 = smul.addr %s691, 16
        %s693 = scalar_lea.vmem [#allocation2], %s692
        %p694 = scmp.lt.s32.totalorder %s27, 1
        %s695 = scalar_select %p694, %s27, 1
        %p696 = scmp.lt.s32.totalorder %s28, 0
        %s697 = scalar_select %p696, %s28, 0
        %s698 = smul.addr %s695, 8
        %s699 = sadd.s32 %s697, %s698
        %s700 = smul.addr %s699, 4
        %s701 = scalar_lea.vmem %s4, %s700
        %s702 = sand.u32 %s171, 1
        %s703 = scalar_lea.sflag [#allocation5], %s702
        %s704 = sand.u32 %s171, 1
        %s705 = smul.addr %s704, 16
        %s706 = scalar_lea.vmem [#allocation4], %s705
        // Predicated region
        $region33: #{tpu_custom_call.1} parent=31 // pred_check
          %p707 = pneg %p125
        $region34: #{tpu_custom_call.1} parent=31 // pred_check_branch
          %709 = sbr.rel (%p707) target = $region36
        $region35: #{tpu_custom_call.1} parent=31 // pred_region
          %s711 = ssub.s32 256, 256
          %712 = vsyncadd %s690, %s711
          %s713 = smul.addr %s27, 4
          %s714 = sadd.s32 %s28, %s713
          %s715 = smul.addr %s714, 64
          %s716 = scalar_lea.hbm %s3, %s715
          %s717 = sshll.u32 %s693, 4
          %s718 = int_to_ptr.vmem [resolvable:$true] %s717
          %723 = dma.vmem_to_hbm [thread:$0]  %s718, 256, %s716, %s690, 64, 64, 4
        $region36: #{tpu_custom_call.1} parent=31 // pred_fallthru
          _
        // Predicated region
        $region37: #{tpu_custom_call.1} parent=31 // pred_check
          %p724 = pneg %p153
        $region38: #{tpu_custom_call.1} parent=31 // pred_check_branch
          %726 = sbr.rel (%p724) target = $region40
        $region39: #{tpu_custom_call.1} parent=31 // pred_region
          _
        $region40: #{tpu_custom_call.1} parent=31 // pred_fallthru
          _
        // Predicated region
        $region41: #{tpu_custom_call.1} parent=31 // pred_check
          %p727 = pneg %p181
        $region42: #{tpu_custom_call.1} parent=31 // pred_check_branch
          %729 = sbr.rel (%p727) target = $region44
        $region43: #{tpu_custom_call.1} parent=31 // pred_region
          %s731 = ssub.s32 256, 256
          %732 = vsyncadd %s703, %s731
          %s733 = smul.addr %s27, 4
          %s734 = sadd.s32 %s28, %s733
          %s735 = smul.addr %s734, 64
          %s736 = scalar_lea.hbm %s5, %s735
          %s737 = sshll.u32 %s706, 4
          %s738 = int_to_ptr.vmem [resolvable:$true] %s737
          %743 = dma.vmem_to_hbm [thread:$0]  %s738, 256, %s736, %s703, 64, 64, 4
        $region44: #{tpu_custom_call.1} parent=31 // pred_fallthru
          _
      $region32: #{tpu_custom_call.1} parent=5 // pred_fallthru
        _
      %p744 = scmp.le.s32.totalorder 2, %s18
      // Predicated region
      $region45: #{tpu_custom_call.1} parent=5 // pred_check
        %p745 = pneg %p744
      $region46: #{tpu_custom_call.1} parent=5 // pred_check_branch
        %747 = sbr.rel (%p745) target = $region48
      $region47: #{tpu_custom_call.1} parent=5 // pred_region
        %s748 = ssub.s32 %s18, 2
        // Predicated region
        $region49: #{tpu_custom_call.1} parent=47 // pred_check
          %p749 = pneg %p131
        $region50: #{tpu_custom_call.1} parent=47 // pred_check_branch
          %751 = sbr.rel (%p749) target = $region52
        $region51: #{tpu_custom_call.1} parent=47 // pred_region
          %s752 = sand.u32 %s116, 1
          %s753 = scalar_lea.sflag [#allocation3], %s752
          %s754 = sand.u32 %s116, 1
          %s755 = smul.addr %s754, 16
          %s756 = scalar_lea.vmem [#allocation2], %s755
          %757 = dma.done %s753, 256
        $region52: #{tpu_custom_call.1} parent=47 // pred_fallthru
          _
        // Predicated region
        $region53: #{tpu_custom_call.1} parent=47 // pred_check
          %p758 = pneg %p159
        $region54: #{tpu_custom_call.1} parent=47 // pred_check_branch
          %760 = sbr.rel (%p758) target = $region56
        $region55: #{tpu_custom_call.1} parent=47 // pred_region
          %p761 = scmp.lt.s32.totalorder %s29, 1
          %s762 = scalar_select %p761, %s29, 1
          %p763 = scmp.lt.s32.totalorder %s30, 0
          %s764 = scalar_select %p763, %s30, 0
          %s765 = smul.addr %s762, 8
          %s766 = sadd.s32 %s764, %s765
          %s767 = smul.addr %s766, 4
          %s768 = scalar_lea.vmem %s4, %s767
        $region56: #{tpu_custom_call.1} parent=47 // pred_fallthru
          _
        // Predicated region
        $region57: #{tpu_custom_call.1} parent=47 // pred_check
          %p769 = pneg %p187
        $region58: #{tpu_custom_call.1} parent=47 // pred_check_branch
          %771 = sbr.rel (%p769) target = $region60
        $region59: #{tpu_custom_call.1} parent=47 // pred_region
          %s772 = sand.u32 %s172, 1
          %s773 = scalar_lea.sflag [#allocation5], %s772
          %s774 = sand.u32 %s172, 1
          %s775 = smul.addr %s774, 16
          %s776 = scalar_lea.vmem [#allocation4], %s775
          %777 = dma.done %s773, 256
        $region60: #{tpu_custom_call.1} parent=47 // pred_fallthru
          _
      $region48: #{tpu_custom_call.1} parent=5 // pred_fallthru
        _
    $region6: #{tpu_custom_call.1} parent=1 // loop_footer
      %s22 = sadd.s32 1, %s18
    $region7: #{tpu_custom_call.1} parent=1 // loop_footer_branch
      %17 = sbr.rel target = $region3
    $region8: #{tpu_custom_call.1} parent=1 // loop_exit
      _
    %778 = vsyncpa [#allocation3], 1
    %s779 = scalar_lea.sflag [#allocation3], 1
    %780 = vsyncpa %s779, 1
    %781 = vsyncpa [#allocation5], 1
    %s782 = scalar_lea.sflag [#allocation5], 1
    %783 = vsyncpa %s782, 1

</llo_original>
